<compile_context>
chip_gen: v5e
topology: v5e:2x2
jax: 0.10.0
libtpu: 0.0.40
codegen_flags: <defaults>
</compile_context>

<pallas_src>
import math

import jax
import jax.numpy as jnp
import numpy as np
from jax.experimental import pallas as pl
from jax.experimental.pallas import tpu as pltpu

LANE = 128
SUBLANE = 8


# ----------------------------------------------------------------------------
# Kernel: element-wise sum of K input tiles into one output tile
# ----------------------------------------------------------------------------
def _add_kernel(*refs):
    *in_refs, o_ref = refs
    if jnp.issubdtype(o_ref.dtype, jnp.floating):
        acc_dtype = jnp.float32
    else:
        acc_dtype = o_ref.dtype
    acc = in_refs[0][...].astype(acc_dtype)
    for r in in_refs[1:]:                      # K is small & static -> unrolled
        acc = acc + r[...].astype(acc_dtype)
    o_ref[...] = acc.astype(o_ref.dtype)


# ----------------------------------------------------------------------------
# Tile-size heuristic: biggest sublane-aligned row tile that fits VMEM budget
# ----------------------------------------------------------------------------
def _choose_block_rows(rows, n_arrays, itemsize, vmem_budget_bytes=8 * 1024 * 1024):
    # (K inputs + 1 output), each double-buffered by the BlockSpec pipeline.
    bytes_per_row = (n_arrays + 1) * 2 * LANE * itemsize
    max_rows = max(SUBLANE, vmem_budget_bytes // bytes_per_row)
    block_rows = min(rows, max_rows)
    block_rows = max(SUBLANE, (block_rows // SUBLANE) * SUBLANE)
    return block_rows


# ----------------------------------------------------------------------------
# Wrapper: flatten to a lane-dense (rows, 128) layout, tile rows over a grid
# ----------------------------------------------------------------------------
def add_pallas(xs):
    """Element-wise sum of a list/tuple of same-shaped arrays (Pallas TPU)."""
    xs = list(xs)
    if len(xs) == 1:
        return xs[0]

    shape = xs[0].shape
    out_dtype = xs[0].dtype
    total = math.prod(shape) if shape else 1
    itemsize = jnp.dtype(out_dtype).itemsize

    chunk = LANE * SUBLANE
    padded_total = ((total + chunk - 1) // chunk) * chunk
    rows = padded_total // LANE

    if padded_total == total:
        # Fast path: already a multiple of 8*128 — pure reshape, no copy needed.
        flat = [x.reshape(rows, LANE) for x in xs]
    else:
        # Zero-pad to a lane-dense slab; zeros are sum-neutral. Costs one extra
        # pass per input but keeps all kernel stores unmasked full-vreg vst.
        pad = padded_total - total
        flat = [
            jnp.pad(x.reshape(-1), (0, pad)).reshape(rows, LANE) for x in xs
        ]

    block_rows = _choose_block_rows(rows, len(flat), itemsize)
    grid = (pl.cdiv(rows, block_rows),)

    spec = pl.BlockSpec((block_rows, LANE), lambda i: (i, 0))
    out = pl.pallas_call(
        _add_kernel,
        out_shape=jax.ShapeDtypeStruct((rows, LANE), out_dtype),
        grid=grid,
        in_specs=[spec] * len(flat),
        out_specs=spec,
        compiler_params=pltpu.CompilerParams(
            dimension_semantics=("parallel",),        # megacore split on v7x
            vmem_limit_bytes=64 * 1024 * 1024,        # headroom for many inputs
        ),
    )(*flat)

    if padded_total == total:
        return out.reshape(shape)
    return out.reshape(-1)[:total].reshape(shape)


# ----------------------------------------------------------------------------
# Self-test
# ----------------------------------------------------------------------------
if __name__ == "__main__":
    key = jax.random.PRNGKey(0)
    k1, k2, k3 = jax.random.split(key, 3)

    shape = (2, 4, 16, 16)                       # list of 3 tensors, NCHW-like
    xs = [jax.random.normal(k, shape, jnp.float32) for k in (k1, k2, k3)]

    fwd = jax.jit(lambda *ts: add_pallas(ts))
    out = jax.block_until_ready(fwd(*xs))

    # Pure-JAX reference of torch.sum(torch.stack(x, 0), 0)
    ref = jnp.sum(jnp.stack(xs, axis=0), axis=0)
    assert out.shape == shape
    np.testing.assert_allclose(np.asarray(out), np.asarray(ref),
                               rtol=1e-6, atol=1e-6)

    # Exercise the padded (non 8*128-multiple) path too.
    shape2 = (3, 5, 7)
    ys = [jax.random.normal(k, shape2, jnp.float32) for k in (k1, k2, k3)]
    out2 = jax.block_until_ready(jax.jit(lambda *ts: add_pallas(ts))(*ys))
    ref2 = jnp.sum(jnp.stack(ys, axis=0), axis=0)
    np.testing.assert_allclose(np.asarray(out2), np.asarray(ref2),
                               rtol=1e-6, atol=1e-6)

    print("KERNEL_OK")
</pallas_src>

<mosaic_0001>
module attributes {stable_mosaic.version = 11 : i64} {
  func.func @_add_kernel(%arg0: i32, %arg1: memref<16x128xf32, #tpu.memory_space<vmem>>, %arg2: memref<16x128xf32, #tpu.memory_space<vmem>>, %arg3: memref<16x128xf32, #tpu.memory_space<vmem>>, %arg4: memref<16x128xf32, #tpu.memory_space<vmem>>) attributes {dimension_semantics = [#tpu.dimension_semantics<parallel>], iteration_bounds = array<i64: 1>, scalar_prefetch = 0 : i64, scratch_operands = 0 : i64, tpu.core_type = #tpu.core_type<tc>, window_params = [{transform_indices = @transform_0, window_bounds = array<i64: 16, 128>}, {transform_indices = @transform_1, window_bounds = array<i64: 16, 128>}, {transform_indices = @transform_2, window_bounds = array<i64: 16, 128>}, {transform_indices = @transform_3, window_bounds = array<i64: 16, 128>}]} {
    %c0 = arith.constant 0 : index
    %c0_0 = arith.constant 0 : index
    %0 = vector.load %arg1[%c0, %c0_0] : memref<16x128xf32, #tpu.memory_space<vmem>>, vector<16x128xf32>
    %c0_1 = arith.constant 0 : index
    %c0_2 = arith.constant 0 : index
    %1 = vector.load %arg2[%c0_1, %c0_2] : memref<16x128xf32, #tpu.memory_space<vmem>>, vector<16x128xf32>
    %2 = arith.addf %0, %1 : vector<16x128xf32>
    %c0_3 = arith.constant 0 : index
    %c0_4 = arith.constant 0 : index
    %3 = vector.load %arg3[%c0_3, %c0_4] : memref<16x128xf32, #tpu.memory_space<vmem>>, vector<16x128xf32>
    %4 = arith.addf %2, %3 : vector<16x128xf32>
    %c0_5 = arith.constant 0 : index
    %c0_6 = arith.constant 0 : index
    %5 = vector.load %arg4[%c0_5, %c0_6] : memref<16x128xf32, #tpu.memory_space<vmem>>, vector<16x128xf32>
    tpu.vector_store %arg4[%c0_5, %c0_6], %4 {strides = array<i32>} : memref<16x128xf32, #tpu.memory_space<vmem>>, vector<16x128xf32>,
    return
  }
  func.func @transform_0(%arg0: i32) -> (i32, i32) {
    %c0_i32 = arith.constant 0 : i32
    %c0_i32_0 = arith.constant 0 : i32
    return %arg0, %c0_i32 : i32, i32
  }
  func.func @transform_1(%arg0: i32) -> (i32, i32) {
    %c0_i32 = arith.constant 0 : i32
    %c0_i32_0 = arith.constant 0 : i32
    return %arg0, %c0_i32 : i32, i32
  }
  func.func @transform_2(%arg0: i32) -> (i32, i32) {
    %c0_i32 = arith.constant 0 : i32
    %c0_i32_0 = arith.constant 0 : i32
    return %arg0, %c0_i32 : i32, i32
  }
  func.func @transform_3(%arg0: i32) -> (i32, i32) {
    %c0_i32 = arith.constant 0 : i32
    %c0_i32_0 = arith.constant 0 : i32
    return %arg0, %c0_i32 : i32, i32
  }
}

</mosaic_0001>

<llo_original>
// kernel: _lambda_.1
$region0: #{_lambda_.1}
  #allocation0 [shape = 'u32[]', space=smem, size = 0x4, offset = 0x4, fixed_abs, tag = 'smem constant byte address 0x4 - core index']
  #allocation1 [shape = 'u32[72,128]{1,0:T(1,128)}', space=vmem, size = 0x9000, scoped, tag = 'internal scratch']
  %s0 = inlined_call_operand.vmem [shape: f32[16,128], index: 0, kind: input, shape index: {}]
  %s1 = inlined_call_operand.vmem [shape: f32[16,128], index: 1, kind: input, shape index: {}]
  %s2 = inlined_call_operand.vmem [shape: f32[16,128], index: 2, kind: input, shape index: {}]
  %s3 = inlined_call_operand.vmem [shape: f32[16,128], index: 3, kind: output, shape index: {}]
  %s4 = sld [smem:[#allocation0]]
  $region22: #{_lambda_.1} parent=0
    _
  %s6 = ssub.s32 1, %s4
  %s7 = scalar_select 0, %s6, %s4
  // Predicated region
  $region2: #{_lambda_.1} parent=0 // pred_check
    _
  $region3: #{_lambda_.1} parent=0 // pred_check_branch
    %9 = sbr.rel (0) target = $region5
  $region4: #{_lambda_.1} parent=0 // pred_region
    _
  $region5: #{_lambda_.1} parent=0 // pred_fallthru
    _
  // Predicated region
  $region6: #{_lambda_.1} parent=0 // pred_check
    _
  $region7: #{_lambda_.1} parent=0 // pred_check_branch
    %11 = sbr.rel (0) target = $region9
  $region8: #{_lambda_.1} parent=0 // pred_region
    _
  $region9: #{_lambda_.1} parent=0 // pred_fallthru
    _
  // Predicated region
  $region10: #{_lambda_.1} parent=0 // pred_check
    _
  $region11: #{_lambda_.1} parent=0 // pred_check_branch
    %13 = sbr.rel (0) target = $region13
  $region12: #{_lambda_.1} parent=0 // pred_region
    _
  $region13: #{_lambda_.1} parent=0 // pred_fallthru
    _
  %v14 = vld [vmem:[%s0] sm:$0xff]
  %v15 = vld [vmem:[%s0 + $0x8] sm:$0xff]
  %v16 = vld [vmem:[%s1] sm:$0xff]
  %v17 = vld [vmem:[%s1 + $0x8] sm:$0xff]
  %v18 = vadd.f32 %v14, %v16
  %v19 = vadd.f32 %v15, %v17
  %v20 = vld [vmem:[%s2] sm:$0xff]
  %v21 = vld [vmem:[%s2 + $0x8] sm:$0xff]
  %v22 = vadd.f32 %v18, %v20
  %v23 = vadd.f32 %v19, %v21
  %24 = vst [vmem:[%s3] sm:$0xff] %v22
  %25 = vst [vmem:[%s3 + $0x8] sm:$0xff] %v23
  // Predicated region
  $region14: #{_lambda_.1} parent=0 // pred_check
    _
  $region15: #{_lambda_.1} parent=0 // pred_check_branch
    %27 = sbr.rel (0) target = $region17
  $region16: #{_lambda_.1} parent=0 // pred_region
    _
  $region17: #{_lambda_.1} parent=0 // pred_fallthru
    _
  // Predicated region
  $region18: #{_lambda_.1} parent=0 // pred_check
    _
  $region19: #{_lambda_.1} parent=0 // pred_check_branch
    %29 = sbr.rel (0) target = $region21
  $region20: #{_lambda_.1} parent=0 // pred_region
    _
  $region21: #{_lambda_.1} parent=0 // pred_fallthru
    _

</llo_original>
